<compile_context>
chip_gen: v6e
topology: v6e:2x2x1
jax: 0.10.0
libtpu: 0.0.40
codegen_flags: <defaults>
</compile_context>

<pallas_src>
import math

import jax
import jax.numpy as jnp
from jax.experimental import pallas as pl
from jax.experimental.pallas import tpu as pltpu

# Small synthetic sizes consistent with the module's forward contract.
B, S, D, D_FF, P, VOCAB = 2, 8, 32, 64, 3, 50
BS = B * S
LANE = 128                     # TPU lane width: logits / small params padded to this

# ---- packed slab geometry ---------------------------------------------------------
W_ROWS = 5 * D + D_FF          # 224 rows x 128 lanes of bf16 weights (56 KB)
HEAD_ROWS = 8 + BS             # 8 bias/LN rows + BS rows of additive block-diag mask
MASK_ROW0 = 8

# Static row offsets into the bf16 weight slab (all multiples of the (16,128) bf16 tile).
_R_MV = 0                      # [D, 2D]   (Wq.Wk^T / sqrt(D) | Wv)
_R_WO = D                      # [D, D]
_R_W1 = 2 * D                  # [D, D_FF]
_R_W2 = 3 * D                  # [D_FF, D]
_R_WS = 3 * D + D_FF           # [D, D]
_R_WL = 4 * D + D_FF           # [D, LANE]  (Wlog, P -> 128 zero-padded)


def _layernorm(x, gamma, beta, eps=1e-12):
    mu = jnp.mean(x, axis=-1, keepdims=True)
    var = jnp.mean((x - mu) ** 2, axis=-1, keepdims=True)
    return (x - mu) * jax.lax.rsqrt(var + eps) * gamma + beta


def _gelu(x):
    c = math.sqrt(2.0 / math.pi)
    return 0.5 * x * (1.0 + jnp.tanh(c * (x + 0.044715 * x * x * x)))


def xlnet_spc_kernel(x_ref, wslab_ref, head_ref, out_ref):
    f32, bf16 = jnp.float32, jnp.bfloat16

    x = x_ref[...]                                     # [BS, D] f32
    xb = x.astype(bf16)

    # ---- unpack the small f32 head slab (one aligned (8,128) load) ----------------
    head = head_ref[0:8, :]
    ln1_g = head[0:1, 0:D]
    ln1_b = head[1:2, 0:D]
    ln2_g = head[2:3, 0:D]
    ln2_b = head[3:4, 0:D]
    b1    = head[4:5, 0:D_FF]
    b2    = head[5:6, 0:D]
    b_sum = head[6:7, 0:D]
    b_log = head[7:8, :]                               # [1, 128], bl zero-padded
    # pack-time additive block-diagonal mask (0 within a sequence, -1e30 across)
    mask_bias = head_ref[MASK_ROW0:MASK_ROW0 + BS, 0:BS]   # [BS, BS] f32

    # ---- fused (Wq.Wk^T/sqrt(D) | Wv) projection: one bf16 MXU matmul, one col tile
    xp = jnp.dot(xb, wslab_ref[_R_MV:_R_MV + D, 0:2 * D],
                 preferred_element_type=f32)           # [BS, 2D]
    qm = xp[:, 0:D]                                    # x @ (Wq Wk^T / sqrt(D))
    v = xp[:, D:2 * D]                                 # x @ Wv  (cheap lane relayout)

    # ---- stand-in self-attention: scores = (x M) x^T + block-diag bias ------------
    scores = jax.lax.dot_general(qm.astype(bf16), xb,
                                 (((1,), (1,)), ((), ())),
                                 preferred_element_type=f32) + mask_bias   # [BS, BS]

    m = jnp.max(scores, axis=-1, keepdims=True)
    e = jnp.exp(scores - m)
    denom = jnp.sum(e, axis=-1, keepdims=True)
    attn = e * pl.reciprocal(denom, approx=True)       # EUP divide
    ctx = jnp.dot(attn.astype(bf16), v.astype(bf16),
                  preferred_element_type=f32)          # [BS, D]

    attn_out = jnp.dot(ctx.astype(bf16), wslab_ref[_R_WO:_R_WO + D, 0:D],
                       preferred_element_type=f32)
    h = _layernorm(x + attn_out, ln1_g, ln1_b)         # f32 [BS, D]

    # ---- feed-forward --------------------------------------------------------------
    ff = _gelu(jnp.dot(h.astype(bf16), wslab_ref[_R_W1:_R_W1 + D, 0:D_FF],
                       preferred_element_type=f32) + b1)
    ff = jnp.dot(ff.astype(bf16), wslab_ref[_R_W2:_R_W2 + D_FF, 0:D],
                 preferred_element_type=f32) + b2
    h = _layernorm(h + ff, ln2_g, ln2_b)               # [BS, D]

    # ---- gather the B last-token rows (static slices; B, S are compile-time) ------
    h_last = jnp.concatenate(
        [h[i * S + S - 1:i * S + S, :] for i in range(B)], axis=0)   # [B, D]

    # ---- SequenceSummary (summary_type="last") -> tanh -> logits -------------------
    summary = jnp.tanh(jnp.dot(h_last.astype(bf16),
                               wslab_ref[_R_WS:_R_WS + D, 0:D],
                               preferred_element_type=f32) + b_sum)  # [B, D]
    logits = jnp.dot(summary.astype(bf16), wslab_ref[_R_WL:_R_WL + D, :],
                     preferred_element_type=f32) + b_log             # [B, 128]
    out_ref[...] = logits


def make_params(key):
    ks = jax.random.split(key, 10)
    n = lambda k, shape, s=0.02: (s * jax.random.normal(k, shape)).astype(jnp.float32)
    return dict(
        tok_emb=n(ks[0], (VOCAB, D)),
        seg_emb=n(ks[1], (2, D)),
        wq=n(ks[2], (D, D)), wk=n(ks[3], (D, D)), wv=n(ks[4], (D, D)), wo=n(ks[5], (D, D)),
        ln1_g=jnp.ones((1, D), jnp.float32), ln1_b=jnp.zeros((1, D), jnp.float32),
        w1=n(ks[6], (D, D_FF)), b1=jnp.zeros((1, D_FF), jnp.float32),
        w2=n(ks[7], (D_FF, D)), b2=jnp.zeros((1, D), jnp.float32),
        ln2_g=jnp.ones((1, D), jnp.float32), ln2_b=jnp.zeros((1, D), jnp.float32),
        ws=n(ks[8], (D, D)), bs=jnp.zeros((1, D), jnp.float32),
        wl=n(ks[9], (D, P)), bl=jnp.zeros((1, P), jnp.float32),
    )


def pack_params(p):
    """One-time packing of all parameters into two DMA-friendly slabs."""
    bf16 = jnp.bfloat16

    # Wq.Wk^T / sqrt(D) folded offline in f32, rounded once to bf16.
    m_scaled = (p['wq'] @ p['wk'].T) / math.sqrt(D)

    wslab = jnp.zeros((W_ROWS, LANE), bf16)
    wslab = wslab.at[_R_MV:_R_MV + D, 0:D].set(m_scaled.astype(bf16))
    wslab = wslab.at[_R_MV:_R_MV + D, D:2 * D].set(p['wv'].astype(bf16))
    wslab = wslab.at[_R_WO:_R_WO + D, 0:D].set(p['wo'].astype(bf16))
    wslab = wslab.at[_R_W1:_R_W1 + D, 0:D_FF].set(p['w1'].astype(bf16))
    wslab = wslab.at[_R_W2:_R_W2 + D_FF, 0:D].set(p['w2'].astype(bf16))
    wslab = wslab.at[_R_WS:_R_WS + D, 0:D].set(p['ws'].astype(bf16))
    wslab = wslab.at[_R_WL:_R_WL + D, 0:P].set(p['wl'].astype(bf16))

    head = jnp.zeros((HEAD_ROWS, LANE), jnp.float32)
    head = head.at[0, 0:D].set(p['ln1_g'][0])
    head = head.at[1, 0:D].set(p['ln1_b'][0])
    head = head.at[2, 0:D].set(p['ln2_g'][0])
    head = head.at[3, 0:D].set(p['ln2_b'][0])
    head = head.at[4, 0:D_FF].set(p['b1'][0])
    head = head.at[5, 0:D].set(p['b2'][0])
    head = head.at[6, 0:D].set(p['bs'][0])
    head = head.at[7, 0:P].set(p['bl'][0])
    # block-diagonal additive mask bias baked at pack time (B, S are static)
    row_b = jnp.arange(BS)[:, None] // S
    col_b = jnp.arange(BS)[None, :] // S
    bias = jnp.where(row_b == col_b, 0.0, -1e30).astype(jnp.float32)
    head = head.at[MASK_ROW0:MASK_ROW0 + BS, 0:BS].set(bias)

    return dict(wslab=wslab, head=head)


def xlnet_spc_forward(text_bert_indices, bert_segments_ids, params, packed):
    b, s = text_bert_indices.shape
    # glue: embedding gather (data-dependent) stays in plain JAX; pre-flatten to 2-D.
    x2 = (params['tok_emb'][text_bert_indices]
          + params['seg_emb'][bert_segments_ids]).astype(jnp.float32).reshape(b * s, D)

    vmem = pl.BlockSpec(memory_space=pltpu.MemorySpace.VMEM)
    logits_all = pl.pallas_call(
        xlnet_spc_kernel,
        out_shape=jax.ShapeDtypeStruct((b, LANE), jnp.float32),
        in_specs=[vmem, vmem, vmem],
        out_specs=vmem,
    )(x2, packed['wslab'], packed['head'])

    # lane-dense [B, 128] kernel output -> [B, P] logits
    return logits_all[:, :P]


def reference_forward(text_bert_indices, bert_segments_ids, params):
    # pure-JAX reference with identical semantics (bf16 MXU operands, f32 elementwise)
    f32, bf16 = jnp.float32, jnp.bfloat16
    x = (params['tok_emb'][text_bert_indices]
         + params['seg_emb'][bert_segments_ids]).astype(f32)
    b, s, d = x.shape
    x2 = x.reshape(b * s, d)
    xb = x2.astype(bf16)
    q = jnp.dot(xb, params['wq'].astype(bf16), preferred_element_type=f32).reshape(b, s, d)
    k = jnp.dot(xb, params['wk'].astype(bf16), preferred_element_type=f32).reshape(b, s, d)
    v = jnp.dot(xb, params['wv'].astype(bf16), preferred_element_type=f32).reshape(b, s, d)
    scale = 1.0 / math.sqrt(d)
    scores = jnp.einsum('bsd,btd->bst', q.astype(bf16), k.astype(bf16),
                        preferred_element_type=f32) * scale
    attn = jax.nn.softmax(scores, axis=-1)
    ctx = jnp.einsum('bst,btd->bsd', attn.astype(bf16), v.astype(bf16),
                     preferred_element_type=f32).reshape(b * s, d)
    attn_out = jnp.dot(ctx.astype(bf16), params['wo'].astype(bf16),
                       preferred_element_type=f32)
    h = _layernorm(x2 + attn_out, params['ln1_g'], params['ln1_b'])
    ff = _gelu(jnp.dot(h.astype(bf16), params['w1'].astype(bf16),
                       preferred_element_type=f32) + params['b1'])
    ff = jnp.dot(ff.astype(bf16), params['w2'].astype(bf16),
                 preferred_element_type=f32) + params['b2']
    h = _layernorm(h + ff, params['ln2_g'], params['ln2_b']).reshape(b, s, d)
    last = h[:, -1, :]
    summary = jnp.tanh(jnp.dot(last.astype(bf16), params['ws'].astype(bf16),
                               preferred_element_type=f32) + params['bs'])
    return jnp.dot(summary.astype(bf16), params['wl'].astype(bf16),
                   preferred_element_type=f32) + params['bl']


if __name__ == "__main__":
    key = jax.random.PRNGKey(0)
    k_param, k_tok, k_seg = jax.random.split(key, 3)
    params = make_params(k_param)
    packed = pack_params(params)

    text_bert_indices = jax.random.randint(k_tok, (B, S), 0, VOCAB, dtype=jnp.int32)
    bert_segments_ids = jax.random.randint(k_seg, (B, S), 0, 2, dtype=jnp.int32)

    logits = xlnet_spc_forward(text_bert_indices, bert_segments_ids, params, packed)
    logits = jax.block_until_ready(logits)

    ref = reference_forward(text_bert_indices, bert_segments_ids, params)
    assert logits.shape == (B, P)
    # intended divergences vs. the reference: approx reciprocal in softmax and the
    # one-time bf16 rounding of the folded Wq.Wk^T/sqrt(D) matrix (both << tolerance)
    assert jnp.allclose(logits, ref, atol=1e-3, rtol=1e-2)

    print("KERNEL_OK")
</pallas_src>

<mosaic_0001>
module attributes {stable_mosaic.version = 11 : i64} {
  func.func @xlnet_spc_kernel(%arg0: memref<16x32xf32, #tpu.memory_space<vmem>>, %arg1: memref<224x128xbf16, #tpu.memory_space<vmem>>, %arg2: memref<24x128xf32, #tpu.memory_space<vmem>>, %arg3: memref<2x128xf32, #tpu.memory_space<vmem>>) attributes {dimension_semantics = [], scalar_prefetch = 0 : i64, scratch_operands = 0 : i64, tpu.core_type = #tpu.core_type<tc>} {
    %c0 = arith.constant 0 : index
    %c0_0 = arith.constant 0 : index
    %0 = vector.load %arg0[%c0, %c0_0] : memref<16x32xf32, #tpu.memory_space<vmem>>, vector<16x32xf32>
    %1 = arith.truncf %0 : vector<16x32xf32> to vector<16x32xbf16>
    %c0_1 = arith.constant 0 : index
    %c0_2 = arith.constant 0 : index
    %2 = vector.load %arg2[%c0_1, %c0_2] : memref<24x128xf32, #tpu.memory_space<vmem>>, vector<8x128xf32>
    %3 = vector.extract_strided_slice %2 {offsets = [0, 0], sizes = [1, 32], strides = [1, 1]} : vector<8x128xf32> to vector<1x32xf32>
    %4 = vector.extract_strided_slice %2 {offsets = [1, 0], sizes = [1, 32], strides = [1, 1]} : vector<8x128xf32> to vector<1x32xf32>
    %5 = vector.extract_strided_slice %2 {offsets = [2, 0], sizes = [1, 32], strides = [1, 1]} : vector<8x128xf32> to vector<1x32xf32>
    %6 = vector.extract_strided_slice %2 {offsets = [3, 0], sizes = [1, 32], strides = [1, 1]} : vector<8x128xf32> to vector<1x32xf32>
    %7 = vector.extract_strided_slice %2 {offsets = [4, 0], sizes = [1, 64], strides = [1, 1]} : vector<8x128xf32> to vector<1x64xf32>
    %8 = vector.extract_strided_slice %2 {offsets = [5, 0], sizes = [1, 32], strides = [1, 1]} : vector<8x128xf32> to vector<1x32xf32>
    %9 = vector.extract_strided_slice %2 {offsets = [6, 0], sizes = [1, 32], strides = [1, 1]} : vector<8x128xf32> to vector<1x32xf32>
    %10 = vector.extract_strided_slice %2 {offsets = [7, 0], sizes = [1, 128], strides = [1, 1]} : vector<8x128xf32> to vector<1x128xf32>
    %c8 = arith.constant 8 : index
    %c0_3 = arith.constant 0 : index
    %11 = vector.load %arg2[%c8, %c0_3] : memref<24x128xf32, #tpu.memory_space<vmem>>, vector<16x16xf32>
    %c0_4 = arith.constant 0 : index
    %c0_5 = arith.constant 0 : index
    %12 = vector.load %arg1[%c0_4, %c0_5] : memref<224x128xbf16, #tpu.memory_space<vmem>>, vector<32x64xbf16>
    %cst = arith.constant dense<0.000000e+00> : vector<16x64xf32>
    %13 = tpu.matmul %1, %12, %cst {dimension_numbers = #tpu.dot_dimension_numbers<[1], [0], [0], [1], [0, 0, 1, 1], [], []>} : vector<16x32xbf16>, vector<32x64xbf16>, vector<16x64xf32> -> vector<16x64xf32>
    %14 = vector.extract_strided_slice %13 {offsets = [0, 0], sizes = [16, 32], strides = [1, 1]} : vector<16x64xf32> to vector<16x32xf32>
    %15 = vector.extract_strided_slice %13 {offsets = [0, 32], sizes = [16, 32], strides = [1, 1]} : vector<16x64xf32> to vector<16x32xf32>
    %16 = arith.truncf %14 : vector<16x32xf32> to vector<16x32xbf16>
    %cst_6 = arith.constant dense<0.000000e+00> : vector<16x16xf32>
    %17 = tpu.matmul %16, %1, %cst_6 {dimension_numbers = #tpu.dot_dimension_numbers<[1], [1], [0], [0], [0, 0, 1, 0], [], []>} : vector<16x32xbf16>, vector<16x32xbf16>, vector<16x16xf32> -> vector<16x16xf32>
    %18 = arith.addf %17, %11 : vector<16x16xf32>
    %cst_7 = arith.constant dense<0xFF800000> : vector<16xf32>
    %19 = vector.multi_reduction <maximumf>, %18, %cst_7 [1] : vector<16x16xf32> to vector<16xf32>
    %20 = vector.shape_cast %19 : vector<16xf32> to vector<16x1xf32>
    %21 = vector.broadcast %20 : vector<16x1xf32> to vector<16x16xf32>
    %22 = arith.subf %18, %21 : vector<16x16xf32>
    %23 = math.exp %22 : vector<16x16xf32>
    %cst_8 = arith.constant dense<0.000000e+00> : vector<16xf32>
    %24 = vector.multi_reduction <add>, %23, %cst_8 [1] : vector<16x16xf32> to vector<16xf32>
    %25 = vector.shape_cast %24 : vector<16xf32> to vector<16x1xf32>
    %26 = tpu.reciprocal %25 {approx = true} : vector<16x1xf32> -> vector<16x1xf32>
    %27 = vector.broadcast %26 : vector<16x1xf32> to vector<16x16xf32>
    %28 = arith.mulf %23, %27 : vector<16x16xf32>
    %29 = arith.truncf %28 : vector<16x16xf32> to vector<16x16xbf16>
    %30 = arith.truncf %15 : vector<16x32xf32> to vector<16x32xbf16>
    %cst_9 = arith.constant dense<0.000000e+00> : vector<16x32xf32>
    %31 = tpu.matmul %29, %30, %cst_9 {dimension_numbers = #tpu.dot_dimension_numbers<[1], [0], [0], [1], [0, 0, 1, 1], [], []>} : vector<16x16xbf16>, vector<16x32xbf16>, vector<16x32xf32> -> vector<16x32xf32>
    %32 = arith.truncf %31 : vector<16x32xf32> to vector<16x32xbf16>
    %c32 = arith.constant 32 : index
    %c0_10 = arith.constant 0 : index
    %33 = vector.load %arg1[%c32, %c0_10] : memref<224x128xbf16, #tpu.memory_space<vmem>>, vector<32x32xbf16>
    %cst_11 = arith.constant dense<0.000000e+00> : vector<16x32xf32>
    %34 = tpu.matmul %32, %33, %cst_11 {dimension_numbers = #tpu.dot_dimension_numbers<[1], [0], [0], [1], [0, 0, 1, 1], [], []>} : vector<16x32xbf16>, vector<32x32xbf16>, vector<16x32xf32> -> vector<16x32xf32>
    %35 = arith.addf %0, %34 : vector<16x32xf32>
    %cst_12 = arith.constant dense<0.000000e+00> : vector<16xf32>
    %36 = vector.multi_reduction <add>, %35, %cst_12 [1] : vector<16x32xf32> to vector<16xf32>
    %37 = vector.shape_cast %36 : vector<16xf32> to vector<16x1xf32>
    %cst_13 = arith.constant 3.200000e+01 : f32
    %38 = vector.broadcast %cst_13 : f32 to vector<16x1xf32>
    %39 = arith.divf %37, %38 : vector<16x1xf32>
    %40 = vector.broadcast %39 : vector<16x1xf32> to vector<16x32xf32>
    %41 = arith.subf %35, %40 : vector<16x32xf32>
    %42 = arith.mulf %41, %41 : vector<16x32xf32>
    %cst_14 = arith.constant dense<0.000000e+00> : vector<16xf32>
    %43 = vector.multi_reduction <add>, %42, %cst_14 [1] : vector<16x32xf32> to vector<16xf32>
    %44 = vector.shape_cast %43 : vector<16xf32> to vector<16x1xf32>
    %cst_15 = arith.constant 3.200000e+01 : f32
    %45 = vector.broadcast %cst_15 : f32 to vector<16x1xf32>
    %46 = arith.divf %44, %45 : vector<16x1xf32>
    %47 = vector.broadcast %39 : vector<16x1xf32> to vector<16x32xf32>
    %48 = arith.subf %35, %47 : vector<16x32xf32>
    %cst_16 = arith.constant 9.99999996E-13 : f32
    %49 = vector.broadcast %cst_16 : f32 to vector<16x1xf32>
    %50 = arith.addf %46, %49 : vector<16x1xf32>
    %51 = math.rsqrt %50 : vector<16x1xf32>
    %52 = vector.broadcast %51 : vector<16x1xf32> to vector<16x32xf32>
    %53 = arith.mulf %48, %52 : vector<16x32xf32>
    %54 = vector.broadcast %3 : vector<1x32xf32> to vector<16x32xf32>
    %55 = arith.mulf %53, %54 : vector<16x32xf32>
    %56 = vector.broadcast %4 : vector<1x32xf32> to vector<16x32xf32>
    %57 = arith.addf %55, %56 : vector<16x32xf32>
    %58 = arith.truncf %57 : vector<16x32xf32> to vector<16x32xbf16>
    %c64 = arith.constant 64 : index
    %c0_17 = arith.constant 0 : index
    %59 = vector.load %arg1[%c64, %c0_17] : memref<224x128xbf16, #tpu.memory_space<vmem>>, vector<32x64xbf16>
    %cst_18 = arith.constant dense<0.000000e+00> : vector<16x64xf32>
    %60 = tpu.matmul %58, %59, %cst_18 {dimension_numbers = #tpu.dot_dimension_numbers<[1], [0], [0], [1], [0, 0, 1, 1], [], []>} : vector<16x32xbf16>, vector<32x64xbf16>, vector<16x64xf32> -> vector<16x64xf32>
    %61 = vector.broadcast %7 : vector<1x64xf32> to vector<16x64xf32>
    %62 = arith.addf %60, %61 : vector<16x64xf32>
    %cst_19 = arith.constant 5.000000e-01 : f32
    %63 = vector.broadcast %cst_19 : f32 to vector<16x64xf32>
    %64 = arith.mulf %63, %62 : vector<16x64xf32>
    %cst_20 = arith.constant 4.471500e-02 : f32
    %65 = vector.broadcast %cst_20 : f32 to vector<16x64xf32>
    %66 = arith.mulf %65, %62 : vector<16x64xf32>
    %67 = arith.mulf %66, %62 : vector<16x64xf32>
    %68 = arith.mulf %67, %62 : vector<16x64xf32>
    %69 = arith.addf %62, %68 : vector<16x64xf32>
    %cst_21 = arith.constant 0.797884583 : f32
    %70 = vector.broadcast %cst_21 : f32 to vector<16x64xf32>
    %71 = arith.mulf %70, %69 : vector<16x64xf32>
    %72 = math.tanh %71 : vector<16x64xf32>
    %cst_22 = arith.constant 1.000000e+00 : f32
    %73 = vector.broadcast %cst_22 : f32 to vector<16x64xf32>
    %74 = arith.addf %73, %72 : vector<16x64xf32>
    %75 = arith.mulf %64, %74 : vector<16x64xf32>
    %76 = arith.truncf %75 : vector<16x64xf32> to vector<16x64xbf16>
    %c96 = arith.constant 96 : index
    %c0_23 = arith.constant 0 : index
    %77 = vector.load %arg1[%c96, %c0_23] : memref<224x128xbf16, #tpu.memory_space<vmem>>, vector<64x32xbf16>
    %cst_24 = arith.constant dense<0.000000e+00> : vector<16x32xf32>
    %78 = tpu.matmul %76, %77, %cst_24 {dimension_numbers = #tpu.dot_dimension_numbers<[1], [0], [0], [1], [0, 0, 1, 1], [], []>} : vector<16x64xbf16>, vector<64x32xbf16>, vector<16x32xf32> -> vector<16x32xf32>
    %79 = vector.broadcast %8 : vector<1x32xf32> to vector<16x32xf32>
    %80 = arith.addf %78, %79 : vector<16x32xf32>
    %81 = arith.addf %57, %80 : vector<16x32xf32>
    %cst_25 = arith.constant dense<0.000000e+00> : vector<16xf32>
    %82 = vector.multi_reduction <add>, %81, %cst_25 [1] : vector<16x32xf32> to vector<16xf32>
    %83 = vector.shape_cast %82 : vector<16xf32> to vector<16x1xf32>
    %cst_26 = arith.constant 3.200000e+01 : f32
    %84 = vector.broadcast %cst_26 : f32 to vector<16x1xf32>
    %85 = arith.divf %83, %84 : vector<16x1xf32>
    %86 = vector.broadcast %85 : vector<16x1xf32> to vector<16x32xf32>
    %87 = arith.subf %81, %86 : vector<16x32xf32>
    %88 = arith.mulf %87, %87 : vector<16x32xf32>
    %cst_27 = arith.constant dense<0.000000e+00> : vector<16xf32>
    %89 = vector.multi_reduction <add>, %88, %cst_27 [1] : vector<16x32xf32> to vector<16xf32>
    %90 = vector.shape_cast %89 : vector<16xf32> to vector<16x1xf32>
    %cst_28 = arith.constant 3.200000e+01 : f32
    %91 = vector.broadcast %cst_28 : f32 to vector<16x1xf32>
    %92 = arith.divf %90, %91 : vector<16x1xf32>
    %93 = vector.broadcast %85 : vector<16x1xf32> to vector<16x32xf32>
    %94 = arith.subf %81, %93 : vector<16x32xf32>
    %cst_29 = arith.constant 9.99999996E-13 : f32
    %95 = vector.broadcast %cst_29 : f32 to vector<16x1xf32>
    %96 = arith.addf %92, %95 : vector<16x1xf32>
    %97 = math.rsqrt %96 : vector<16x1xf32>
    %98 = vector.broadcast %97 : vector<16x1xf32> to vector<16x32xf32>
    %99 = arith.mulf %94, %98 : vector<16x32xf32>
    %100 = vector.broadcast %5 : vector<1x32xf32> to vector<16x32xf32>
    %101 = arith.mulf %99, %100 : vector<16x32xf32>
    %102 = vector.broadcast %6 : vector<1x32xf32> to vector<16x32xf32>
    %103 = arith.addf %101, %102 : vector<16x32xf32>
    %104 = vector.extract_strided_slice %103 {offsets = [7, 0], sizes = [1, 32], strides = [1, 1]} : vector<16x32xf32> to vector<1x32xf32>
    %105 = vector.extract_strided_slice %103 {offsets = [15, 0], sizes = [1, 32], strides = [1, 1]} : vector<16x32xf32> to vector<1x32xf32>
    %106 = tpu.concatenate %104, %105 in 0 : vector<1x32xf32>, vector<1x32xf32> -> vector<2x32xf32>
    %107 = arith.truncf %106 : vector<2x32xf32> to vector<2x32xbf16>
    %c160 = arith.constant 160 : index
    %c0_30 = arith.constant 0 : index
    %108 = vector.load %arg1[%c160, %c0_30] : memref<224x128xbf16, #tpu.memory_space<vmem>>, vector<32x32xbf16>
    %cst_31 = arith.constant dense<0.000000e+00> : vector<2x32xf32>
    %109 = tpu.matmul %107, %108, %cst_31 {dimension_numbers = #tpu.dot_dimension_numbers<[1], [0], [0], [1], [0, 0, 1, 1], [], []>} : vector<2x32xbf16>, vector<32x32xbf16>, vector<2x32xf32> -> vector<2x32xf32>
    %110 = vector.broadcast %9 : vector<1x32xf32> to vector<2x32xf32>
    %111 = arith.addf %109, %110 : vector<2x32xf32>
    %112 = math.tanh %111 : vector<2x32xf32>
    %113 = arith.truncf %112 : vector<2x32xf32> to vector<2x32xbf16>
    %c192 = arith.constant 192 : index
    %c0_32 = arith.constant 0 : index
    %114 = vector.load %arg1[%c192, %c0_32] : memref<224x128xbf16, #tpu.memory_space<vmem>>, vector<32x128xbf16>
    %cst_33 = arith.constant dense<0.000000e+00> : vector<2x128xf32>
    %115 = tpu.matmul %113, %114, %cst_33 {dimension_numbers = #tpu.dot_dimension_numbers<[1], [0], [0], [1], [0, 0, 1, 1], [], []>} : vector<2x32xbf16>, vector<32x128xbf16>, vector<2x128xf32> -> vector<2x128xf32>
    %116 = vector.broadcast %10 : vector<1x128xf32> to vector<2x128xf32>
    %117 = arith.addf %115, %116 : vector<2x128xf32>
    %c0_34 = arith.constant 0 : index
    %c0_35 = arith.constant 0 : index
    %118 = vector.load %arg3[%c0_34, %c0_35] : memref<2x128xf32, #tpu.memory_space<vmem>>, vector<2x128xf32>
    tpu.vector_store %arg3[%c0_34, %c0_35], %117 {strides = array<i32>} : memref<2x128xf32, #tpu.memory_space<vmem>>, vector<2x128xf32>,
    return
  }
}

</mosaic_0001>

<llo_original>
// kernel: tpu_custom_call.1
$region0: #{tpu_custom_call.1}
  #allocation0 [shape = 'u32[]', space=smem, size = 0x4, offset = 0x4, fixed_abs, tag = 'smem constant byte address 0x4 - core index']
  #allocation1 [shape = 'u32[144,128]{1,0:T(1,128)}', space=vmem, size = 0x12000, scoped, tag = 'internal scratch']
  %s0 = inlined_call_operand.hbm [shape: f32[16,32], index: 0, kind: input, shape index: {}]
  %s1 = inlined_call_operand.hbm [shape: bf16[224,128], index: 1, kind: input, shape index: {}]
  %s2 = inlined_call_operand.hbm [shape: f32[24,128], index: 2, kind: input, shape index: {}]
  %s3 = inlined_call_operand.hbm [shape: f32[2,128], index: 3, kind: output, shape index: {}]
  %s4 = sld [smem:[#allocation0]]
  $region34: #{tpu_custom_call.1} parent=0
    _
  %s6 = ssub.s32 1, %s4
  %s7 = scalar_select 0, %s6, %s4
  $region1: #{tpu_custom_call.1} parent=0
    #allocation2 [shape = 'u8[8192]{0}', space=vmem, size = 0x2000, scoped, tag = 'input window, operand 0, single buffered']
    #allocation3 [shape = 's32[1]{0}', space=sflag, size = 0x4, scoped, tag = 'scoped memory for tpu_custom_call.1']
    #allocation4 [shape = 's32[1]{0}', space=sflag, size = 0x4, scoped, tag = 'scoped memory for tpu_custom_call.1']
    #allocation5 [shape = 'u8[57344]{0}', space=vmem, size = 0xe000, scoped, tag = 'input window, operand 1, single buffered']
    #allocation6 [shape = 's32[1]{0}', space=sflag, size = 0x4, scoped, tag = 'scoped memory for tpu_custom_call.1']
    #allocation7 [shape = 'u8[12288]{0}', space=vmem, size = 0x3000, scoped, tag = 'input window, operand 2, single buffered']
    #allocation8 [shape = 'u8[1024]{0}', space=vmem, size = 0x400, scoped, tag = 'output window, operand 0, single buffered']
    %8 = vsyncpa [#allocation3], 0
    %9 = vsyncpa [#allocation6], 0
    %10 = vsyncpa [#allocation4], 0
    // Predicated region
    $region2: #{tpu_custom_call.1} parent=1 // pred_check
      _
    $region3: #{tpu_custom_call.1} parent=1 // pred_check_branch
      %12 = sbr.rel (0) target = $region5
    $region4: #{tpu_custom_call.1} parent=1 // pred_region
      %s14 = ssub.s32 256, 256
      %15 = vsyncadd [#allocation3], %s14
      %s16 = sshll.u32 [#allocation2], 4
      %s17 = int_to_ptr.vmem [resolvable:$true] %s16
      %22 = dma.hbm_to_vmem [thread:$0]  %s0, 256, %s17, [#allocation3], 128, 128, 8
    $region5: #{tpu_custom_call.1} parent=1 // pred_fallthru
      _
    // Predicated region
    $region6: #{tpu_custom_call.1} parent=1 // pred_check
      _
    $region7: #{tpu_custom_call.1} parent=1 // pred_check_branch
      %24 = sbr.rel (0) target = $region9
    $region8: #{tpu_custom_call.1} parent=1 // pred_region
      %s26 = ssub.s32 1792, 1792
      %27 = vsyncadd [#allocation6], %s26
      %s28 = sshll.u32 [#allocation5], 4
      %s29 = int_to_ptr.vmem [resolvable:$true] %s28
      %34 = dma.hbm_to_vmem [thread:$0]  %s1, 1792, %s29, [#allocation6], 64, 64, 4
    $region9: #{tpu_custom_call.1} parent=1 // pred_fallthru
      _
    // Predicated region
    $region10: #{tpu_custom_call.1} parent=1 // pred_check
      _
    $region11: #{tpu_custom_call.1} parent=1 // pred_check_branch
      %36 = sbr.rel (0) target = $region13
    $region12: #{tpu_custom_call.1} parent=1 // pred_region
      %s38 = ssub.s32 384, 384
      %39 = vsyncadd [#allocation6], %s38
      %s40 = sshll.u32 [#allocation7], 4
      %s41 = int_to_ptr.vmem [resolvable:$true] %s40
      %46 = dma.hbm_to_vmem [thread:$0]  %s2, 384, %s41, [#allocation6], 128, 128, 8
    $region13: #{tpu_custom_call.1} parent=1 // pred_fallthru
      _
    // Predicated region
    $region14: #{tpu_custom_call.1} parent=1 // pred_check
      _
    $region15: #{tpu_custom_call.1} parent=1 // pred_check_branch
      %48 = sbr.rel (0) target = $region17
    $region16: #{tpu_custom_call.1} parent=1 // pred_region
      %49 = dma.done [#allocation3], 256
    $region17: #{tpu_custom_call.1} parent=1 // pred_fallthru
      _
    // Predicated region
    $region18: #{tpu_custom_call.1} parent=1 // pred_check
      _
    $region19: #{tpu_custom_call.1} parent=1 // pred_check_branch
      %51 = sbr.rel (0) target = $region21
    $region20: #{tpu_custom_call.1} parent=1 // pred_region
      %52 = dma.done [#allocation6], 1792
    $region21: #{tpu_custom_call.1} parent=1 // pred_fallthru
      _
    // Predicated region
    $region22: #{tpu_custom_call.1} parent=1 // pred_check
      _
    $region23: #{tpu_custom_call.1} parent=1 // pred_check_branch
      %54 = sbr.rel (0) target = $region25
    $region24: #{tpu_custom_call.1} parent=1 // pred_region
      %55 = dma.done [#allocation6], 384
    $region25: #{tpu_custom_call.1} parent=1 // pred_fallthru
      _
    %v57 = vld [vmem:[#allocation2] sm:$0xff]
    %v58 = vld [vmem:[#allocation2 + $0x8] sm:$0xff]
    %v59 = vpack.c.bf16 %v58, %v57
    %v60 = vld [vmem:[#allocation7] sm:$0xff]
    %v61 = vld [vmem:[#allocation7 + $0x8] sm:$0xff]
    %v62 = vld [vmem:[#allocation7 + $0x10] sm:$0xff]
    %v63 = vld [vmem:[#allocation5] sm:$0xf]
    %v64 = vld [vmem:[#allocation5 + $0x4] sm:$0xf]
    %v65 = vld [vmem:[#allocation5 + $0x8] sm:$0xf]
    %v66 = vld [vmem:[#allocation5 + $0xc] sm:$0xf]
    %v71 = vunpack.c.l.b16 %v63
    %v72 = vunpack.c.l.b16 %v64
    %v73 = vunpack.c.l.b16 %v65
    %v74 = vunpack.c.l.b16 %v66
    %v75 = vpack.c.b16 %v72, %v71
    %v76 = vpack.c.b16 %v74, %v73
    %vm79 = vcmask 261120
    %v81 = vsel %vm79, %v59, 0
    %83 = vmatprep.subr.bf16.mxu0 0
    %84 = vmatpush1.bf16.msra.mxu0 0
    %85 = vmatprep.subr.bf16.mxu0 0
    %86 = vmatpush1.bf16.msra.mxu0 0
    %87 = vmatprep.subr.bf16.mxu0 0
    %88 = vmatpush1.bf16.msra.mxu0 0
    %89 = vmatprep.subr.bf16.mxu0 0
    %90 = vmatpush1.bf16.msra.mxu0 0
    %91 = vmatprep.subr.bf16.mxu0 0
    %92 = vmatpush1.bf16.msra.mxu0 0
    %93 = vmatprep.subr.bf16.mxu0 0
    %94 = vmatpush1.bf16.msra.mxu0 0
    %95 = vmatprep.subr.bf16.mxu0 0
    %96 = vmatpush1.bf16.msra.mxu0 %v76
    %97 = vmatprep.subr.bf16.mxu0 0
    %98 = vmatpush1.bf16.msra.mxu0 %v75
    %99 = vmatprep.subr.bf16.mxu0 0
    %100 = vmatpush2.bf16.msra.mxu0 0
    %101 = vmatprep.subr.bf16.mxu0 0
    %102 = vmatpush2.bf16.msra.mxu0 0
    %103 = vmatprep.subr.bf16.mxu0 0
    %104 = vmatpush2.bf16.msra.mxu0 0
    %105 = vmatprep.subr.bf16.mxu0 0
    %106 = vmatpush2.bf16.msra.mxu0 0
    %107 = vmatprep.subr.bf16.mxu0 0
    %108 = vmatpush2.bf16.msra.mxu0 0
    %109 = vmatprep.subr.bf16.mxu0 0
    %110 = vmatpush2.bf16.msra.mxu0 0
    %111 = vmatprep.subr.bf16.mxu0 0
    %112 = vmatpush2.bf16.msra.mxu0 0
    %113 = vmatprep.subr.bf16.mxu0 0
    %114 = vmatpush2.bf16.msra.mxu0 0
    %115 = vmatprep.mubr.bf16.mxu0 0
    %116 = vmatmul.mubr.bf16.gmra.mxu0 %v81
    %v117 = vpop.f32.mrf.mxu0
    %v118 = vadd.f32 0.0, %v117
    %v119 = vpop.f32.mrf.mxu0
    %v120 = vpop.f32.mrf.mxu0
    %v121 = vadd.f32 0.0, %v120
    %v122 = vpop.f32.mrf.mxu0
    %123 = vdwg.mxu0
    %v124 = vpack.c.bf16 %v121, %v118
    %v126 = vsel %vm79, %v124, 0
    %128 = vmatprep.subr.bf16.mxu0 0
    %129 = vmatpush1.bf16.xpose.msra.mxu0 0
    %130 = vmatprep.subr.bf16.mxu0 0
    %131 = vmatpush1.bf16.xpose.msra.mxu0 0
    %132 = vmatprep.subr.bf16.mxu0 0
    %133 = vmatpush1.bf16.xpose.msra.mxu0 0
    %134 = vmatprep.subr.bf16.mxu0 0
    %135 = vmatpush1.bf16.xpose.msra.mxu0 0
    %136 = vmatprep.subr.bf16.mxu0 0
    %137 = vmatpush1.bf16.xpose.msra.mxu0 0
    %138 = vmatprep.subr.bf16.mxu0 0
    %139 = vmatpush1.bf16.xpose.msra.mxu0 0
    %140 = vmatprep.subr.bf16.mxu0 0
    %141 = vmatpush1.bf16.xpose.msra.mxu0 0
    %142 = vmatprep.subr.bf16.mxu0 0
    %143 = vmatpush1.bf16.xpose.msra.mxu0 %v81
    %144 = vmatprep.subr.bf16.mxu0 0
    %145 = vmatpush2.bf16.xpose.msra.mxu0 0
    %146 = vmatprep.subr.bf16.mxu0 0
    %147 = vmatpush2.bf16.xpose.msra.mxu0 0
    %148 = vmatprep.subr.bf16.mxu0 0
    %149 = vmatpush2.bf16.xpose.msra.mxu0 0
    %150 = vmatprep.subr.bf16.mxu0 0
    %151 = vmatpush2.bf16.xpose.msra.mxu0 0
    %152 = vmatprep.subr.bf16.mxu0 0
    %153 = vmatpush2.bf16.xpose.msra.mxu0 0
    %154 = vmatprep.subr.bf16.mxu0 0
    %155 = vmatpush2.bf16.xpose.msra.mxu0 0
    %156 = vmatprep.subr.bf16.mxu0 0
    %157 = vmatpush2.bf16.xpose.msra.mxu0 0
    %158 = vmatprep.subr.bf16.mxu0 0
    %159 = vmatpush2.bf16.xpose.msra.mxu0 0
    %160 = vmatprep.mubr.bf16.mxu0 0
    %161 = vmatmul.mubr.bf16.gmra.mxu0 %v126
    %v162 = vpop.f32.mrf.mxu0
    %v163 = vadd.f32 %v61, %v162
    %v164 = vpop.f32.mrf.mxu0
    %v165 = vpop.f32.mrf.mxu0
    %v166 = vadd.f32 %v62, %v165
    %v167 = vpop.f32.mrf.mxu0
    %168 = vdwg.mxu0
    %vm169 = vcmask 130048
    %v170 = vsel %vm169, %v163, -inf
    %171 = vmax.xlane.f32.xlu0 %v170
    %v172 = vpop.xlane.xlu0 %171
    %v173 = vsel %vm169, %v166, -inf
    %174 = vmax.xlane.f32.xlu0 %v173
    %v175 = vpop.xlane.xlu0 %174
    %v176 = vsub.f32 %v163, %v172
    %v177 = vsub.f32 %v166, %v175
    %v178 = vmul.f32 %v176, 1.442695
    %v179 = vpow.pop %v178
    %v180 = vmul.f32 %v177, 1.442695
    %v181 = vpow.pop %v180
    %v182 = vsel %vm169, %v179, 0.0
    %183 = vadd.xlane.f32.xlu0 %v182
    %v184 = vpop.xlane.xlu0 %183
    %v185 = vsel %vm169, %v181, 0.0
    %186 = vadd.xlane.f32.xlu0 %v185
    %v187 = vpop.xlane.xlu0 %186
    %v188 = vrcp.pop %v184
    %v189 = vrcp.pop %v187
    %v190 = vmul.f32 %v179, %v188
    %v191 = vmul.f32 %v181, %v189
    %v192 = vpack.c.bf16 %v191, %v190
    %194 = vrot.lane.b32.xlu0 %v124, 96
    %v195 = vpop.permute.xlu0 %194
    %v198 = vsel %vm169, %v192, 0
    %200 = vmatprep.subr.bf16.mxu0 0
    %201 = vmatpush1.bf16.msra.mxu0 0
    %202 = vmatprep.subr.bf16.mxu0 0
    %203 = vmatpush1.bf16.msra.mxu0 0
    %204 = vmatprep.subr.bf16.mxu0 0
    %205 = vmatpush1.bf16.msra.mxu0 0
    %206 = vmatprep.subr.bf16.mxu0 0
    %207 = vmatpush1.bf16.msra.mxu0 0
    %208 = vmatprep.subr.bf16.mxu0 0
    %209 = vmatpush1.bf16.msra.mxu0 0
    %210 = vmatprep.subr.bf16.mxu0 0
    %211 = vmatpush1.bf16.msra.mxu0 0
    %212 = vmatprep.subr.bf16.mxu0 0
    %213 = vmatpush1.bf16.msra.mxu0 0
    %214 = vmatprep.subr.bf16.mxu0 0
    %215 = vmatpush1.bf16.msra.mxu0 %v195
    %216 = vmatprep.subr.bf16.mxu0 0
    %217 = vmatpush2.bf16.msra.mxu0 0
    %218 = vmatprep.subr.bf16.mxu0 0
    %219 = vmatpush2.bf16.msra.mxu0 0
    %220 = vmatprep.subr.bf16.mxu0 0
    %221 = vmatpush2.bf16.msra.mxu0 0
    %222 = vmatprep.subr.bf16.mxu0 0
    %223 = vmatpush2.bf16.msra.mxu0 0
    %224 = vmatprep.subr.bf16.mxu0 0
    %225 = vmatpush2.bf16.msra.mxu0 0
    %226 = vmatprep.subr.bf16.mxu0 0
    %227 = vmatpush2.bf16.msra.mxu0 0
    %228 = vmatprep.subr.bf16.mxu0 0
    %229 = vmatpush2.bf16.msra.mxu0 0
    %230 = vmatprep.subr.bf16.mxu0 0
    %231 = vmatpush2.bf16.msra.mxu0 0
    %232 = vmatprep.mubr.bf16.mxu0 0
    %233 = vmatmul.mubr.bf16.gmra.mxu0 %v198
    %v234 = vpop.f32.mrf.mxu0
    %v235 = vadd.f32 0.0, %v234
    %v236 = vpop.f32.mrf.mxu0
    %v237 = vpop.f32.mrf.mxu0
    %v238 = vadd.f32 0.0, %v237
    %v239 = vpop.f32.mrf.mxu0
    %240 = vdwg.mxu0
    %v241 = vpack.c.bf16 %v238, %v235
    %v242 = vld [vmem:[#allocation5 + $0x10] sm:$0xf]
    %v243 = vld [vmem:[#allocation5 + $0x14] sm:$0xf]
    %v244 = vld [vmem:[#allocation5 + $0x18] sm:$0xf]
    %v245 = vld [vmem:[#allocation5 + $0x1c] sm:$0xf]
    %v250 = vunpack.c.l.b16 %v242
    %v251 = vunpack.c.l.b16 %v243
    %v252 = vunpack.c.l.b16 %v244
    %v253 = vunpack.c.l.b16 %v245
    %v254 = vpack.c.b16 %v251, %v250
    %v255 = vpack.c.b16 %v253, %v252
    %v259 = vsel %vm79, %v241, 0
    %261 = vmatprep.subr.bf16.mxu0 0
    %262 = vmatpush1.bf16.msra.mxu0 0
    %263 = vmatprep.subr.bf16.mxu0 0
    %264 = vmatpush1.bf16.msra.mxu0 0
    %265 = vmatprep.subr.bf16.mxu0 0
    %266 = vmatpush1.bf16.msra.mxu0 0
    %267 = vmatprep.subr.bf16.mxu0 0
    %268 = vmatpush1.bf16.msra.mxu0 0
    %269 = vmatprep.subr.bf16.mxu0 0
    %270 = vmatpush1.bf16.msra.mxu0 0
    %271 = vmatprep.subr.bf16.mxu0 0
    %272 = vmatpush1.bf16.msra.mxu0 0
    %273 = vmatprep.subr.bf16.mxu0 0
    %274 = vmatpush1.bf16.msra.mxu0 %v255
    %275 = vmatprep.subr.bf16.mxu0 0
    %276 = vmatpush1.bf16.msra.mxu0 %v254
    %277 = vmatprep.subr.bf16.mxu0 0
    %278 = vmatpush2.bf16.msra.mxu0 0
    %279 = vmatprep.subr.bf16.mxu0 0
    %280 = vmatpush2.bf16.msra.mxu0 0
    %281 = vmatprep.subr.bf16.mxu0 0
    %282 = vmatpush2.bf16.msra.mxu0 0
    %283 = vmatprep.subr.bf16.mxu0 0
    %284 = vmatpush2.bf16.msra.mxu0 0
    %285 = vmatprep.subr.bf16.mxu0 0
    %286 = vmatpush2.bf16.msra.mxu0 0
    %287 = vmatprep.subr.bf16.mxu0 0
    %288 = vmatpush2.bf16.msra.mxu0 0
    %289 = vmatprep.subr.bf16.mxu0 0
    %290 = vmatpush2.bf16.msra.mxu0 0
    %291 = vmatprep.subr.bf16.mxu0 0
    %292 = vmatpush2.bf16.msra.mxu0 0
    %293 = vmatprep.mubr.bf16.mxu0 0
    %294 = vmatmul.mubr.bf16.gmra.mxu0 %v259
    %v295 = vpop.f32.mrf.mxu0
    %v296 = vadd.f32 0.0, %v295
    %v297 = vpop.f32.mrf.mxu0
    %v298 = vpop.f32.mrf.mxu0
    %v299 = vadd.f32 0.0, %v298
    %v300 = vpop.f32.mrf.mxu0
    %301 = vdwg.mxu0
    %v302 = vadd.f32 %v57, %v296
    %v303 = vadd.f32 %v58, %v299
    %v304 = vsel %vm79, %v302, 0.0
    %305 = vadd.xlane.f32.xlu0 %v304
    %v306 = vpop.xlane.xlu0 %305
    %v307 = vsel %vm79, %v303, 0.0
    %308 = vadd.xlane.f32.xlu0 %v307
    %v309 = vpop.xlane.xlu0 %308
    %v310 = vrcp.pop 32.0
    %v311 = vmul.f32 %v306, %v310
    %v312 = vmul.f32 %v309, %v310
    %v313 = vsub.f32 %v302, %v311
    %v314 = vsub.f32 %v303, %v312
    %v315 = vmul.f32 %v313, %v313
    %v316 = vmul.f32 %v314, %v314
    %v317 = vsel %vm79, %v315, 0.0
    %318 = vadd.xlane.f32.xlu0 %v317
    %v319 = vpop.xlane.xlu0 %318
    %v320 = vsel %vm79, %v316, 0.0
    %321 = vadd.xlane.f32.xlu0 %v320
    %v322 = vpop.xlane.xlu0 %321
    %v323 = vmul.f32 %v319, %v310
    %v324 = vmul.f32 %v322, %v310
    %v325 = vadd.f32 %v323, 1e-12
    %v326 = vadd.f32 %v324, 1e-12
    %v327 = vrsqrt.pop %v325
    %v328 = vrsqrt.pop %v326
    %v329 = vmul.f32 %v313, %v327
    %v330 = vmul.f32 %v314, %v328
    %v331 = vlaneseq
    %v332 = vshrl.u32 %v331, 7
    %v333 = vsub.s32 0, %v332
    %v334 = vrot.slane %v60, %v333
    %v335 = vmul.f32 %v329, %v334
    %v336 = vmul.f32 %v330, %v334
    %v337 = vlaneseq
    %v338 = vshrl.u32 %v337, 7
    %v339 = vsub.s32 1, %v338
    %v340 = vrot.slane %v60, %v339
    %v341 = vadd.f32 %v335, %v340
    %v342 = vadd.f32 %v336, %v340
    %v343 = vpack.c.bf16 %v342, %v341
    %v344 = vld [vmem:[#allocation5 + $0x20] sm:$0xf]
    %v345 = vld [vmem:[#allocation5 + $0x24] sm:$0xf]
    %v346 = vld [vmem:[#allocation5 + $0x28] sm:$0xf]
    %v347 = vld [vmem:[#allocation5 + $0x2c] sm:$0xf]
    %v348 = vlaneseq
    %v349 = vshrl.u32 %v348, 7
    %v350 = vsub.s32 4, %v349
    %v351 = vrot.slane %v60, %v350
    %v356 = vunpack.c.l.b16 %v344
    %v357 = vunpack.c.l.b16 %v345
    %v358 = vunpack.c.l.b16 %v346
    %v359 = vunpack.c.l.b16 %v347
    %v360 = vpack.c.b16 %v357, %v356
    %v361 = vpack.c.b16 %v359, %v358
    %v365 = vsel %vm79, %v343, 0
    %367 = vmatprep.subr.bf16.mxu0 0
    %368 = vmatpush1.bf16.msra.mxu0 0
    %369 = vmatprep.subr.bf16.mxu0 0
    %370 = vmatpush1.bf16.msra.mxu0 0
    %371 = vmatprep.subr.bf16.mxu0 0
    %372 = vmatpush1.bf16.msra.mxu0 0
    %373 = vmatprep.subr.bf16.mxu0 0
    %374 = vmatpush1.bf16.msra.mxu0 0
    %375 = vmatprep.subr.bf16.mxu0 0
    %376 = vmatpush1.bf16.msra.mxu0 0
    %377 = vmatprep.subr.bf16.mxu0 0
    %378 = vmatpush1.bf16.msra.mxu0 0
    %379 = vmatprep.subr.bf16.mxu0 0
    %380 = vmatpush1.bf16.msra.mxu0 %v361
    %381 = vmatprep.subr.bf16.mxu0 0
    %382 = vmatpush1.bf16.msra.mxu0 %v360
    %383 = vmatprep.subr.bf16.mxu0 0
    %384 = vmatpush2.bf16.msra.mxu0 0
    %385 = vmatprep.subr.bf16.mxu0 0
    %386 = vmatpush2.bf16.msra.mxu0 0
    %387 = vmatprep.subr.bf16.mxu0 0
    %388 = vmatpush2.bf16.msra.mxu0 0
    %389 = vmatprep.subr.bf16.mxu0 0
    %390 = vmatpush2.bf16.msra.mxu0 0
    %391 = vmatprep.subr.bf16.mxu0 0
    %392 = vmatpush2.bf16.msra.mxu0 0
    %393 = vmatprep.subr.bf16.mxu0 0
    %394 = vmatpush2.bf16.msra.mxu0 0
    %395 = vmatprep.subr.bf16.mxu0 0
    %396 = vmatpush2.bf16.msra.mxu0 0
    %397 = vmatprep.subr.bf16.mxu0 0
    %398 = vmatpush2.bf16.msra.mxu0 0
    %399 = vmatprep.mubr.bf16.mxu0 0
    %400 = vmatmul.mubr.bf16.gmra.mxu0 %v365
    %v401 = vpop.f32.mrf.mxu0
    %v402 = vadd.f32 %v351, %v401
    %v403 = vpop.f32.mrf.mxu0
    %v404 = vpop.f32.mrf.mxu0
    %v405 = vadd.f32 %v351, %v404
    %v406 = vpop.f32.mrf.mxu0
    %407 = vdwg.mxu0
    %v408 = vmul.f32 %v402, 0.5
    %v409 = vmul.f32 %v405, 0.5
    %v410 = vmul.f32 %v402, 0.044715
    %v411 = vmul.f32 %v405, 0.044715
    %v412 = vmul.f32 %v410, %v402
    %v413 = vmul.f32 %v411, %v405
    %v414 = vmul.f32 %v412, %v402
    %v415 = vmul.f32 %v413, %v405
    %v416 = vadd.f32 %v402, %v414
    %v417 = vadd.f32 %v405, %v415
    %v418 = vmul.f32 %v416, 0.7978846
    %v419 = vmul.f32 %v417, 0.7978846
    %v420 = vtanh.pop %v418
    %v421 = vtanh.pop %v419
    %v422 = vadd.f32 %v420, 1.0
    %v423 = vadd.f32 %v421, 1.0
    %v424 = vmul.f32 %v408, %v422
    %v425 = vmul.f32 %v409, %v423
    %v426 = vpack.c.bf16 %v425, %v424
    %v427 = vld [vmem:[#allocation5 + $0x30] sm:$0xf]
    %v428 = vld [vmem:[#allocation5 + $0x34] sm:$0xf]
    %v429 = vld [vmem:[#allocation5 + $0x38] sm:$0xf]
    %v430 = vld [vmem:[#allocation5 + $0x3c] sm:$0xf]
    %v431 = vld [vmem:[#allocation5 + $0x40] sm:$0xf]
    %v432 = vld [vmem:[#allocation5 + $0x44] sm:$0xf]
    %v433 = vld [vmem:[#allocation5 + $0x48] sm:$0xf]
    %v434 = vld [vmem:[#allocation5 + $0x4c] sm:$0xf]
    %v435 = vlaneseq
    %v436 = vshrl.u32 %v435, 7
    %v437 = vsub.s32 5, %v436
    %v438 = vrot.slane %v60, %v437
    %v447 = vunpack.c.l.b16 %v427
    %v448 = vunpack.c.l.b16 %v428
    %v449 = vunpack.c.l.b16 %v429
    %v450 = vunpack.c.l.b16 %v430
    %v451 = vunpack.c.l.b16 %v431
    %v452 = vunpack.c.l.b16 %v432
    %v453 = vunpack.c.l.b16 %v433
    %v454 = vunpack.c.l.b16 %v434
    %v455 = vpack.c.b16 %v448, %v447
    %v456 = vpack.c.b16 %v450, %v449
    %v457 = vpack.c.b16 %v452, %v451
    %v458 = vpack.c.b16 %v454, %v453
    %vm463 = vcmask 523264
    %v465 = vsel %vm463, %v426, 0
    %467 = vmatprep.subr.bf16.mxu0 0
    %468 = vmatpush1.bf16.msra.mxu0 0
    %469 = vmatprep.subr.bf16.mxu0 0
    %470 = vmatpush1.bf16.msra.mxu0 0
    %471 = vmatprep.subr.bf16.mxu0 0
    %472 = vmatpush1.bf16.msra.mxu0 0
    %473 = vmatprep.subr.bf16.mxu0 0
    %474 = vmatpush1.bf16.msra.mxu0 0
    %475 = vmatprep.subr.bf16.mxu0 0
    %476 = vmatpush1.bf16.msra.mxu0 %v458
    %477 = vmatprep.subr.bf16.mxu0 0
    %478 = vmatpush1.bf16.msra.mxu0 %v457
    %479 = vmatprep.subr.bf16.mxu0 0
    %480 = vmatpush1.bf16.msra.mxu0 %v456
    %481 = vmatprep.subr.bf16.mxu0 0
    %482 = vmatpush1.bf16.msra.mxu0 %v455
    %483 = vmatprep.subr.bf16.mxu0 0
    %484 = vmatpush2.bf16.msra.mxu0 0
    %485 = vmatprep.subr.bf16.mxu0 0
    %486 = vmatpush2.bf16.msra.mxu0 0
    %487 = vmatprep.subr.bf16.mxu0 0
    %488 = vmatpush2.bf16.msra.mxu0 0
    %489 = vmatprep.subr.bf16.mxu0 0
    %490 = vmatpush2.bf16.msra.mxu0 0
    %491 = vmatprep.subr.bf16.mxu0 0
    %492 = vmatpush2.bf16.msra.mxu0 0
    %493 = vmatprep.subr.bf16.mxu0 0
    %494 = vmatpush2.bf16.msra.mxu0 0
    %495 = vmatprep.subr.bf16.mxu0 0
    %496 = vmatpush2.bf16.msra.mxu0 0
    %497 = vmatprep.subr.bf16.mxu0 0
    %498 = vmatpush2.bf16.msra.mxu0 0
    %499 = vmatprep.mubr.bf16.mxu0 0
    %500 = vmatmul.mubr.bf16.gmra.mxu0 %v465
    %v501 = vpop.f32.mrf.mxu0
    %v502 = vadd.f32 %v438, %v501
    %v503 = vpop.f32.mrf.mxu0
    %v504 = vpop.f32.mrf.mxu0
    %v505 = vadd.f32 %v438, %v504
    %v506 = vpop.f32.mrf.mxu0
    %507 = vdwg.mxu0
    %v508 = vadd.f32 %v341, %v502
    %v509 = vadd.f32 %v342, %v505
    %v510 = vsel %vm79, %v508, 0.0
    %511 = vadd.xlane.f32.xlu0 %v510
    %v512 = vpop.xlane.xlu0 %511
    %v513 = vsel %vm79, %v509, 0.0
    %514 = vadd.xlane.f32.xlu0 %v513
    %v515 = vpop.xlane.xlu0 %514
    %v516 = vmul.f32 %v512, %v310
    %v517 = vmul.f32 %v515, %v310
    %v518 = vsub.f32 %v508, %v516
    %v519 = vsub.f32 %v509, %v517
    %v520 = vmul.f32 %v518, %v518
    %v521 = vmul.f32 %v519, %v519
    %v522 = vsel %vm79, %v520, 0.0
    %523 = vadd.xlane.f32.xlu0 %v522
    %v524 = vpop.xlane.xlu0 %523
    %v525 = vsel %vm79, %v521, 0.0
    %526 = vadd.xlane.f32.xlu0 %v525
    %v527 = vpop.xlane.xlu0 %526
    %v528 = vmul.f32 %v524, %v310
    %v529 = vmul.f32 %v527, %v310
    %v530 = vadd.f32 %v528, 1e-12
    %v531 = vadd.f32 %v529, 1e-12
    %v532 = vrsqrt.pop %v530
    %v533 = vrsqrt.pop %v531
    %v534 = vmul.f32 %v518, %v532
    %v535 = vmul.f32 %v519, %v533
    %v536 = vlaneseq
    %v537 = vshrl.u32 %v536, 7
    %v538 = vsub.s32 2, %v537
    %v539 = vrot.slane %v60, %v538
    %v540 = vmul.f32 %v534, %v539
    %v541 = vmul.f32 %v535, %v539
    %v542 = vlaneseq
    %v543 = vshrl.u32 %v542, 7
    %v544 = vsub.s32 3, %v543
    %v545 = vrot.slane %v60, %v544
    %v546 = vadd.f32 %v540, %v545
    %v547 = vadd.f32 %v541, %v545
    %v549 = vrot.slane %v546, 7
    %v552 = vrot.slane %v547, 6
    %vm554 = vcmask 1040384
    %v555 = vsel %vm554, %v549, %v552
    %v556 = vpack.c.bf16 %v555, %v555
    %v557 = vld [vmem:[#allocation5 + $0x50] sm:$0xf]
    %v558 = vld [vmem:[#allocation5 + $0x54] sm:$0xf]
    %v559 = vld [vmem:[#allocation5 + $0x58] sm:$0xf]
    %v560 = vld [vmem:[#allocation5 + $0x5c] sm:$0xf]
    %v561 = vlaneseq
    %v562 = vshrl.u32 %v561, 7
    %v563 = vsub.s32 6, %v562
    %v564 = vrot.slane %v60, %v563
    %v569 = vunpack.c.l.b16 %v557
    %v570 = vunpack.c.l.b16 %v558
    %v571 = vunpack.c.l.b16 %v559
    %v572 = vunpack.c.l.b16 %v560
    %v573 = vpack.c.b16 %v570, %v569
    %v574 = vpack.c.b16 %v572, %v571
    %v578 = vsel %vm79, %v556, 0
    %580 = vmatprep.subr.bf16.mxu0 0
    %581 = vmatpush1.bf16.msra.mxu0 0
    %582 = vmatprep.subr.bf16.mxu0 0
    %583 = vmatpush1.bf16.msra.mxu0 0
    %584 = vmatprep.subr.bf16.mxu0 0
    %585 = vmatpush1.bf16.msra.mxu0 0
    %586 = vmatprep.subr.bf16.mxu0 0
    %587 = vmatpush1.bf16.msra.mxu0 0
    %588 = vmatprep.subr.bf16.mxu0 0
    %589 = vmatpush1.bf16.msra.mxu0 0
    %590 = vmatprep.subr.bf16.mxu0 0
    %591 = vmatpush1.bf16.msra.mxu0 0
    %592 = vmatprep.subr.bf16.mxu0 0
    %593 = vmatpush1.bf16.msra.mxu0 %v574
    %594 = vmatprep.subr.bf16.mxu0 0
    %595 = vmatpush1.bf16.msra.mxu0 %v573
    %596 = vmatprep.subr.bf16.mxu0 0
    %597 = vmatpush2.bf16.msra.mxu0 0
    %598 = vmatprep.subr.bf16.mxu0 0
    %599 = vmatpush2.bf16.msra.mxu0 0
    %600 = vmatprep.subr.bf16.mxu0 0
    %601 = vmatpush2.bf16.msra.mxu0 0
    %602 = vmatprep.subr.bf16.mxu0 0
    %603 = vmatpush2.bf16.msra.mxu0 0
    %604 = vmatprep.subr.bf16.mxu0 0
    %605 = vmatpush2.bf16.msra.mxu0 0
    %606 = vmatprep.subr.bf16.mxu0 0
    %607 = vmatpush2.bf16.msra.mxu0 0
    %608 = vmatprep.subr.bf16.mxu0 0
    %609 = vmatpush2.bf16.msra.mxu0 0
    %610 = vmatprep.subr.bf16.mxu0 0
    %611 = vmatpush2.bf16.msra.mxu0 0
    %612 = vmatprep.mubr.bf16.mxu0 0
    %613 = vmatmul.mubr.bf16.gmra.mxu0 %v578
    %v614 = vpop.f32.mrf.mxu0
    %v615 = vadd.f32 %v564, %v614
    %v616 = vpop.f32.mrf.mxu0
    %v617 = vpop.f32.mrf.mxu0
    %v618 = vpop.f32.mrf.mxu0
    %619 = vdwg.mxu0
    %v620 = vtanh.pop %v615
    %v621 = vpack.c.bf16 %v620, %v620
    %v622 = vld [vmem:[#allocation5 + $0x60] sm:$0xf]
    %v623 = vld [vmem:[#allocation5 + $0x64] sm:$0xf]
    %v624 = vld [vmem:[#allocation5 + $0x68] sm:$0xf]
    %v625 = vld [vmem:[#allocation5 + $0x6c] sm:$0xf]
    %v626 = vlaneseq
    %v627 = vshrl.u32 %v626, 7
    %v628 = vsub.s32 7, %v627
    %v629 = vrot.slane %v60, %v628
    %v634 = vunpack.c.l.b16 %v622
    %v635 = vunpack.c.l.b16 %v623
    %v636 = vunpack.c.l.b16 %v624
    %v637 = vunpack.c.l.b16 %v625
    %v638 = vpack.c.b16 %v635, %v634
    %v639 = vpack.c.b16 %v637, %v636
    %v643 = vsel %vm79, %v621, 0
    %645 = vmatprep.subr.bf16.mxu0 0
    %646 = vmatpush1.bf16.msra.mxu0 0
    %647 = vmatprep.subr.bf16.mxu0 0
    %648 = vmatpush1.bf16.msra.mxu0 0
    %649 = vmatprep.subr.bf16.mxu0 0
    %650 = vmatpush1.bf16.msra.mxu0 0
    %651 = vmatprep.subr.bf16.mxu0 0
    %652 = vmatpush1.bf16.msra.mxu0 0
    %653 = vmatprep.subr.bf16.mxu0 0
    %654 = vmatpush1.bf16.msra.mxu0 0
    %655 = vmatprep.subr.bf16.mxu0 0
    %656 = vmatpush1.bf16.msra.mxu0 0
    %657 = vmatprep.subr.bf16.mxu0 0
    %658 = vmatpush1.bf16.msra.mxu0 %v639
    %659 = vmatprep.subr.bf16.mxu0 0
    %660 = vmatpush1.bf16.msra.mxu0 %v638
    %661 = vmatprep.subr.bf16.mxu0 0
    %662 = vmatpush2.bf16.msra.mxu0 0
    %663 = vmatprep.subr.bf16.mxu0 0
    %664 = vmatpush2.bf16.msra.mxu0 0
    %665 = vmatprep.subr.bf16.mxu0 0
    %666 = vmatpush2.bf16.msra.mxu0 0
    %667 = vmatprep.subr.bf16.mxu0 0
    %668 = vmatpush2.bf16.msra.mxu0 0
    %669 = vmatprep.subr.bf16.mxu0 0
    %670 = vmatpush2.bf16.msra.mxu0 0
    %671 = vmatprep.subr.bf16.mxu0 0
    %672 = vmatpush2.bf16.msra.mxu0 0
    %673 = vmatprep.subr.bf16.mxu0 0
    %674 = vmatpush2.bf16.msra.mxu0 0
    %675 = vmatprep.subr.bf16.mxu0 0
    %676 = vmatpush2.bf16.msra.mxu0 0
    %677 = vmatprep.mubr.bf16.mxu0 0
    %678 = vmatmul.mubr.bf16.gmra.mxu0 %v643
    %v679 = vpop.f32.mrf.mxu0
    %v680 = vadd.f32 %v629, %v679
    %v681 = vpop.f32.mrf.mxu0
    %v682 = vpop.f32.mrf.mxu0
    %v683 = vpop.f32.mrf.mxu0
    %684 = vdwg.mxu0
    %685 = vst [vmem:[#allocation8] sm:$0x3] %v680
    // Predicated region
    $region26: #{tpu_custom_call.1} parent=1 // pred_check
      _
    $region27: #{tpu_custom_call.1} parent=1 // pred_check_branch
      %687 = sbr.rel (0) target = $region29
    $region28: #{tpu_custom_call.1} parent=1 // pred_region
      %s689 = ssub.s32 32, 32
      %690 = vsyncadd [#allocation4], %s689
      %s692 = sshll.u32 [#allocation8], 4
      %s693 = int_to_ptr.vmem [resolvable:$true] %s692
      %695 = dma.vmem_to_hbm [thread:$0]  %s693, 32, %s3, [#allocation4]
    $region29: #{tpu_custom_call.1} parent=1 // pred_fallthru
      _
    // Predicated region
    $region30: #{tpu_custom_call.1} parent=1 // pred_check
      _
    $region31: #{tpu_custom_call.1} parent=1 // pred_check_branch
      %697 = sbr.rel (0) target = $region33
    $region32: #{tpu_custom_call.1} parent=1 // pred_region
      %698 = dma.done [#allocation4], 32
    $region33: #{tpu_custom_call.1} parent=1 // pred_fallthru
      _
    %699 = vsyncpa [#allocation3], 1
    %700 = vsyncpa [#allocation6], 1
    %701 = vsyncpa [#allocation4], 1

</llo_original>
